<compile_context>
chip_gen: v7x
topology: tpu7x:2x2x1
jax: 0.10.0
libtpu: 0.0.40
codegen_flags: <defaults>
</compile_context>

<pallas_src>
import jax
import jax.numpy as jnp
from jax.experimental import pallas as pl
from jax.experimental.pallas import tpu as pltpu


def _broadcast_row_kernel(p_ref, o_ref):
    """o_tile[r, :] = p for every row r of the batch tile.

    p_ref : (1, C)   precomputed softmax probability row (grid-invariant,
                     constant index_map -> stays resident in VMEM)
    o_ref : (TB, C)  one batch tile of the (B, C) output (unpadded lanes)
    """
    o_ref[...] = jnp.broadcast_to(p_ref[...], o_ref.shape)


class FLCNNPallas:
    """Pallas re-implementation of FLCNN.forward (classes > 1 softmax path)."""

    # 4096-row tiles: >= 2048 reaches ~85% of HBM roofline on v6e/v5e and
    # amortizes per-step overhead on v7x; double-buffered VMEM cost ~4 MiB.
    _TB_CAP = 4096

    def __init__(self, classes=10, key=None):
        nc = 2
        if classes == 1:
            # TODO(synk): classes == 1 sigmoid + squeeze path not implemented.
            raise NotImplementedError("classes == 1 (sigmoid) path not implemented")
        self.classes = classes
        self.nc = nc

        if key is None:
            key = jax.random.PRNGKey(0)
        k_w, k_b = jax.random.split(key)
        # nn.Linear default init: U(-1/sqrt(fan_in), 1/sqrt(fan_in)).
        bound = 1.0 / float(jnp.sqrt(jnp.float32(nc * classes)))
        self.fcf_w = jax.random.uniform(
            k_w, (classes, nc * classes), jnp.float32, -bound, bound)
        self.fcf_b = jax.random.uniform(
            k_b, (classes,), jnp.float32, -bound, bound)

        # Exactly as in FLCNN.__init__: v = zeros(nc, classes), S = zeros(nc).
        self.v = jnp.zeros((nc, classes), jnp.float32)
        self.S = jnp.zeros((nc,), jnp.float32)

    def __call__(self, x):
        if len(x) != 2:
            raise Exception('Invalid number of inputs.')
        x0, x1 = x
        if x0.shape[0] != x1.shape[0]:
            raise Exception('Batch sizes of the two inputs must match.')
        # S == 0 for both hosts -> DenseNet121 branches are skipped and each
        # branch output is v[i] repeated over the batch (exact forward
        # semantics of the module as constructed).
        # TODO(synk): DenseNet121 branch (taken only when S[i] != 0) is not
        # implemented in Pallas; it is unreachable with the module's __init__.
        B = x0.shape[0]
        C = self.classes

        # --- grid-invariant part, hoisted out of the kernel (review item 2a):
        # concat([v0, v1]) @ W^T + b followed by an exact softmax.  This is a
        # (1, 2C) x (2C, C) product -> trivial; doing it once here removes the
        # per-grid-step matmul push/pop and the exp/sum/div serial chain.
        feat = self.v.reshape(1, self.nc * C)                      # concat row
        logits = feat @ self.fcf_w.T + self.fcf_b[None, :]         # (1, C)
        p = jax.nn.softmax(logits.astype(jnp.float32), axis=-1)    # (1, C)

        # --- B-scaling part in Pallas: broadcast-store the row over the batch.
        # The module's forward returns the materialized (B, C) tensor, so we
        # keep the Pallas broadcast-store path (review's last item caveat).
        TB = B if B <= self._TB_CAP else self._TB_CAP              # TB%8==0 or TB==B
        grid = (pl.cdiv(B, TB),)

        out = pl.pallas_call(
            _broadcast_row_kernel,
            # Unpadded output: minimum HBM bytes, no post-slice pass.
            out_shape=jax.ShapeDtypeStruct((B, C), jnp.float32),
            grid=grid,
            in_specs=[
                # Tiny probability row; constant index_map -> loaded once and
                # kept resident in VMEM across all grid steps.
                pl.BlockSpec((1, C), lambda i: (0, 0)),
            ],
            # Last block dim == full array dim (C), second-last is either B
            # itself or a multiple of 8 -> satisfies the (8,128) block rule.
            out_specs=pl.BlockSpec((TB, C), lambda i: (i, 0)),
            compiler_params=pltpu.CompilerParams(
                # Batch tiles are independent -> shard across both v7x TCs.
                dimension_semantics=("parallel",)),
        )(p)
        return out


if __name__ == "__main__":
    key = jax.random.PRNGKey(0)
    k_x0, k_x1, k_p = jax.random.split(key, 3)

    # Small shapes consistent with the module's image inputs (NCHW).
    B, Cin, H, W = 2, 3, 16, 16
    x0 = jax.random.normal(k_x0, (B, Cin, H, W), jnp.float32)
    x1 = jax.random.normal(k_x1, (B, Cin, H, W), jnp.float32)

    model = FLCNNPallas(classes=10, key=k_p)
    out = jax.block_until_ready(model((x0, x1)))

    # Pure-JAX reference of the same forward semantics.
    fl0_ref = jnp.tile(model.v[0][None, :], (B, 1))
    fl1_ref = jnp.tile(model.v[1][None, :], (B, 1))
    x_cat_ref = jnp.concatenate([fl0_ref, fl1_ref], axis=1)
    ref = jax.nn.softmax(x_cat_ref @ model.fcf_w.T + model.fcf_b, axis=1)

    assert out.shape == (B, 10), out.shape
    # Exact softmax (no approx reciprocal) -> tight tolerance.
    assert jnp.allclose(out, ref, atol=1e-6, rtol=1e-6), (out, ref)
    # Rows of a softmax sum to 1.
    assert jnp.allclose(jnp.sum(out, axis=1), jnp.ones((B,)), atol=1e-6)

    print("KERNEL_OK")
</pallas_src>

<mosaic_0001>
module attributes {stable_mosaic.version = 11 : i64} {
  func.func @_broadcast_row_kernel(%arg0: i32, %arg1: memref<1x10xf32, #tpu.memory_space<vmem>>, %arg2: memref<2x10xf32, #tpu.memory_space<vmem>>) attributes {dimension_semantics = [#tpu.dimension_semantics<parallel>], iteration_bounds = array<i64: 1>, scalar_prefetch = 0 : i64, scratch_operands = 0 : i64, tpu.core_type = #tpu.core_type<tc>, window_params = [{pipeline_mode = #tpu.pipeline_mode<synchronous>, transform_indices = @transform_0, window_bounds = array<i64: 1, 10>}, {transform_indices = @transform_1, window_bounds = array<i64: 2, 10>}]} {
    %c0 = arith.constant 0 : index
    %c0_0 = arith.constant 0 : index
    %0 = vector.load %arg1[%c0, %c0_0] : memref<1x10xf32, #tpu.memory_space<vmem>>, vector<1x10xf32>
    %1 = vector.shape_cast %0 : vector<1x10xf32> to vector<1x10xf32>
    %2 = vector.broadcast %1 : vector<1x10xf32> to vector<2x10xf32>
    %c0_1 = arith.constant 0 : index
    %c0_2 = arith.constant 0 : index
    %3 = vector.load %arg2[%c0_1, %c0_2] : memref<2x10xf32, #tpu.memory_space<vmem>>, vector<2x10xf32>
    tpu.vector_store %arg2[%c0_1, %c0_2], %2 {strides = array<i32>} : memref<2x10xf32, #tpu.memory_space<vmem>>, vector<2x10xf32>,
    return
  }
  func.func @transform_0(%arg0: i32) -> (i32, i32) {
    %c0_i32 = arith.constant 0 : i32
    %c0_i32_0 = arith.constant 0 : i32
    %c0_i32_1 = arith.constant 0 : i32
    return %c0_i32, %c0_i32_0 : i32, i32
  }
  func.func @transform_1(%arg0: i32) -> (i32, i32) {
    %c0_i32 = arith.constant 0 : i32
    %c0_i32_0 = arith.constant 0 : i32
    return %arg0, %c0_i32 : i32, i32
  }
}

</mosaic_0001>

<llo_original>
// kernel: tpu_custom_call.1
$region0: #{tpu_custom_call.1}
  #allocation0 [shape = 'u32[]', space=smem, size = 0x4, offset = 0x4, fixed_abs, tag = 'smem constant byte address 0x4 - core index']
  #allocation1 [shape = 'u32[144,128]{1,0:T(1,128)}', space=vmem, size = 0x12000, scoped, tag = 'internal scratch']
  %s0 = inlined_call_operand.hbm [shape: f32[1,10], index: 0, kind: input, shape index: {}]
  %s1 = inlined_call_operand.hbm [shape: f32[2,10], index: 1, kind: output, shape index: {}]
  %s2 = sld [smem:[#allocation0]]
  $region18: #{tpu_custom_call.1} parent=0
    _
  %s4 = ssub.s32 1, %s2
  %s5 = scalar_select 0, %s4, %s2
  $region1: #{tpu_custom_call.1} parent=0
    #allocation2 [shape = 'u8[512]{0}', space=vmem, size = 0x400, scoped, tag = 'input window, operand 0, single buffered']
    #allocation3 [shape = 's32[1]{0}', space=sflag, size = 0x4, scoped, tag = 'scoped memory for tpu_custom_call.1']
    #allocation4 [shape = 's32[1]{0}', space=sflag, size = 0x4, scoped, tag = 'scoped memory for tpu_custom_call.1']
    #allocation5 [shape = 'u8[1024]{0}', space=vmem, size = 0x400, scoped, tag = 'output window, operand 0, single buffered']
    %6 = vsyncpa [#allocation3], 0
    %7 = vsyncpa [#allocation4], 0
    // Predicated region
    $region2: #{tpu_custom_call.1} parent=1 // pred_check
      _
    $region3: #{tpu_custom_call.1} parent=1 // pred_check_branch
      %9 = sbr.rel (0) target = $region5
    $region4: #{tpu_custom_call.1} parent=1 // pred_region
      %s11 = ssub.s32 16, 16
      %12 = vsyncadd [#allocation3], %s11
      %s14 = sshll.u32 [#allocation2], 4
      %s15 = int_to_ptr.vmem [resolvable:$true] %s14
      %17 = dma.hbm_to_vmem [thread:$0]  %s0, 16, %s15, [#allocation3]
    $region5: #{tpu_custom_call.1} parent=1 // pred_fallthru
      _
    // Predicated region
    $region6: #{tpu_custom_call.1} parent=1 // pred_check
      _
    $region7: #{tpu_custom_call.1} parent=1 // pred_check_branch
      %19 = sbr.rel (0) target = $region9
    $region8: #{tpu_custom_call.1} parent=1 // pred_region
      %20 = dma.done [#allocation3], 16
    $region9: #{tpu_custom_call.1} parent=1 // pred_fallthru
      _
    %v21 = vld [vmem:[#allocation2] sm:$0x1]
    %v23 = vlaneseq
    %v24 = vshrl.u32 %v23, 7
    %v25 = vsub.s32 0, %v24
    %v26 = vrot.slane %v21, %v25
    %vm28 = vcmask 74752
    %29 = vst.msk [vmem:[#allocation5] sm:$0x3] %vm28, %v26
    // Predicated region
    $region10: #{tpu_custom_call.1} parent=1 // pred_check
      _
    $region11: #{tpu_custom_call.1} parent=1 // pred_check_branch
      %31 = sbr.rel (0) target = $region13
    $region12: #{tpu_custom_call.1} parent=1 // pred_region
      %s33 = ssub.s32 32, 32
      %34 = vsyncadd [#allocation4], %s33
      %s36 = sshll.u32 [#allocation5], 4
      %s37 = int_to_ptr.vmem [resolvable:$true] %s36
      %39 = dma.vmem_to_hbm [thread:$0]  %s37, 32, %s1, [#allocation4]
    $region13: #{tpu_custom_call.1} parent=1 // pred_fallthru
      _
    // Predicated region
    $region14: #{tpu_custom_call.1} parent=1 // pred_check
      _
    $region15: #{tpu_custom_call.1} parent=1 // pred_check_branch
      %41 = sbr.rel (0) target = $region17
    $region16: #{tpu_custom_call.1} parent=1 // pred_region
      %42 = dma.done [#allocation4], 32
    $region17: #{tpu_custom_call.1} parent=1 // pred_fallthru
      _
    %43 = vsyncpa [#allocation3], 1
    %44 = vsyncpa [#allocation4], 1

</llo_original>
